<compile_context>
chip_gen: v7x
topology: tpu7x:2x2x1
jax: 0.10.0
libtpu: 0.0.40
codegen_flags: <defaults>
</compile_context>

<pallas_src>
import math
import functools

import jax
import jax.numpy as jnp
from jax import lax
from jax.experimental import pallas as pl
from jax.experimental.pallas import tpu as pltpu


def _round_up(x, m):
    return ((x + m - 1) // m) * m


def _flash_attention_kernel(q_ref, k_ref, v_ref, vl_ref, o_ref,
                            m_sc, l_sc, acc_sc, *, scale):
    """One (batch, q-tile) accumulator carried across the K grid axis.

    q_ref  : VMEM (1, tq, Dp)
    k_ref  : VMEM (1, tk, Dp)
    v_ref  : VMEM (1, tk, Dvp)
    vl_ref : VMEM (1, tq, 1) int32   per-query valid length
    o_ref  : VMEM (1, tq, Dvp)
    m_sc, l_sc : VMEM (tq, 1) f32 ; acc_sc : VMEM (tq, Dvp) f32
    """
    ki = pl.program_id(2)

    @pl.when(ki == 0)
    def _init():
        m_sc[...] = jnp.full_like(m_sc, -jnp.inf)
        l_sc[...] = jnp.zeros_like(l_sc)
        acc_sc[...] = jnp.zeros_like(acc_sc)

    # Fold 1/sqrt(d) into q (tq*D multiplies) instead of scores (tq*tk).
    q = q_ref[0] * jnp.asarray(scale, q_ref.dtype)          # (tq, Dp)
    k = k_ref[0]                                            # (tk, Dp)
    v = v_ref[0]                                            # (tk, Dvp)
    tk = k.shape[0]

    # Q @ K^T as a contraction over the feature dim — no materialized transpose.
    s = lax.dot_general(q, k, (((1,), (1,)), ((), ())),
                        preferred_element_type=jnp.float32)  # (tq, tk)

    # sequence_mask: key positions >= valid_len get -1e6 (matches masked_softmax).
    col_ids = ki * tk + lax.broadcasted_iota(jnp.int32, (1, tk), 1)  # (1, tk)
    vl = vl_ref[0]                                                   # (tq, 1)
    s = jnp.where(col_ids < vl, s, jnp.float32(-1000000.0))

    # Online softmax update.
    m_prev = m_sc[...]
    m_new = jnp.maximum(m_prev, jnp.max(s, axis=-1, keepdims=True))
    alpha = jnp.exp(m_prev - m_new)
    p = jnp.exp(s - m_new)
    l_sc[...] = alpha * l_sc[...] + jnp.sum(p, axis=-1, keepdims=True)
    acc_sc[...] = alpha * acc_sc[...] + jnp.dot(
        p.astype(v.dtype), v, preferred_element_type=jnp.float32)
    m_sc[...] = m_new

    @pl.when(ki == pl.num_programs(2) - 1)
    def _finalize():
        l = l_sc[...]
        inv_l = pl.reciprocal(l, approx=True)    # EUP vrcp, off the VPU path
        inv_l = inv_l * (2.0 - l * inv_l)        # one Newton step -> f32 accuracy
        o_ref[0] = (acc_sc[...] * inv_l).astype(o_ref.dtype)


def dot_product_attention(queries, keys, values, valid_lens=None,
                          *, block_q=256, block_k=256):
    """queries: [B, Q, D], keys: [B, K, D], values: [B, K, Dv],
    valid_lens: None, int32[B], or int32[B, Q].  Returns [B, Q, Dv]."""
    B, Q, D = queries.shape
    _, K, _ = keys.shape
    Dv = values.shape[-1]

    # masked_softmax semantics: 1-D valid_lens shared by all queries of a batch
    # element (repeat_interleave); 2-D is per (batch, query); None = no mask.
    if valid_lens is None:
        vl = jnp.full((B, Q), K, dtype=jnp.int32)
    elif valid_lens.ndim == 1:
        vl = jnp.broadcast_to(valid_lens.astype(jnp.int32)[:, None], (B, Q))
    else:
        vl = valid_lens.astype(jnp.int32)

    # Lane-dense feature dims (multiple of 128); tile-aligned sequence dims.
    Dp = _round_up(D, 128)
    Dvp = _round_up(Dv, 128)
    tq = min(block_q, _round_up(Q, 8))
    tk = min(block_k, _round_up(K, 8))
    Qp = _round_up(Q, tq)
    Kp = _round_up(K, tk)

    q_p = jnp.pad(queries, ((0, 0), (0, Qp - Q), (0, Dp - D)))
    k_p = jnp.pad(keys,    ((0, 0), (0, Kp - K), (0, Dp - D)))
    v_p = jnp.pad(values,  ((0, 0), (0, Kp - K), (0, Dvp - Dv)))
    vl_p = jnp.pad(vl, ((0, 0), (0, Qp - Q)))[..., None]       # (B, Qp, 1)

    grid = (B, Qp // tq, Kp // tk)
    kernel = functools.partial(_flash_attention_kernel, scale=1.0 / math.sqrt(D))

    itemsize = jnp.dtype(queries.dtype).itemsize
    flops = 2 * B * Qp * Kp * (Dp + Dvp)
    bytes_accessed = ((q_p.size + k_p.size + v_p.size) * itemsize
                      + vl_p.size * 4 + B * Qp * Dvp * itemsize)

    out_p = pl.pallas_call(
        kernel,
        grid_spec=pltpu.PrefetchScalarGridSpec(
            num_scalar_prefetch=0,
            grid=grid,
            in_specs=[
                pl.BlockSpec((1, tq, Dp),  lambda b, qi, ki: (b, qi, 0)),
                pl.BlockSpec((1, tk, Dp),  lambda b, qi, ki: (b, ki, 0)),
                pl.BlockSpec((1, tk, Dvp), lambda b, qi, ki: (b, ki, 0)),
                pl.BlockSpec((1, tq, 1),   lambda b, qi, ki: (b, qi, 0)),
            ],
            out_specs=pl.BlockSpec((1, tq, Dvp), lambda b, qi, ki: (b, qi, 0)),
            scratch_shapes=[
                pltpu.VMEM((tq, 1), jnp.float32),      # running max m
                pltpu.VMEM((tq, 1), jnp.float32),      # running denom l
                pltpu.VMEM((tq, Dvp), jnp.float32),    # output accumulator
            ],
        ),
        out_shape=jax.ShapeDtypeStruct((B, Qp, Dvp), queries.dtype),
        compiler_params=pltpu.CompilerParams(
            dimension_semantics=("parallel", "parallel", "arbitrary"),
            vmem_limit_bytes=32 * 1024 * 1024,
        ),
        cost_estimate=pl.CostEstimate(
            flops=flops,
            transcendentals=B * Qp * Kp,
            bytes_accessed=bytes_accessed),
    )(q_p, k_p, v_p, vl_p)

    return out_p[:, :Q, :Dv]


def _reference(queries, keys, values, valid_lens):
    d = queries.shape[-1]
    scores = jnp.einsum("bqd,bkd->bqk", queries, keys) / math.sqrt(d)
    if valid_lens is not None:
        K = scores.shape[-1]
        if valid_lens.ndim == 1:
            mask = jnp.arange(K)[None, None, :] < valid_lens[:, None, None]
        else:
            mask = jnp.arange(K)[None, None, :] < valid_lens[:, :, None]
        scores = jnp.where(mask, scores, -1000000.0)
    weights = jax.nn.softmax(scores, axis=-1)
    return jnp.einsum("bqk,bkv->bqv", weights, values)


if __name__ == "__main__":
    key = jax.random.PRNGKey(0)
    kq, kk, kv = jax.random.split(key, 3)

    B, Q, K, D, Dv = 2, 8, 8, 32, 32
    queries = jax.random.normal(kq, (B, Q, D), dtype=jnp.float32)
    keys = jax.random.normal(kk, (B, K, D), dtype=jnp.float32)
    values = jax.random.normal(kv, (B, K, Dv), dtype=jnp.float32)
    valid_lens = jnp.array([3, 6], dtype=jnp.int32)

    # masked path
    out = jax.block_until_ready(dot_product_attention(queries, keys, values, valid_lens))
    ref = _reference(queries, keys, values, valid_lens)
    assert out.shape == (B, Q, Dv)
    assert jnp.allclose(out, ref, atol=1e-4, rtol=1e-4), "mismatch vs reference (masked)"

    # unmasked path (valid_lens=None)
    out_n = jax.block_until_ready(dot_product_attention(queries, keys, values, None))
    ref_n = _reference(queries, keys, values, None)
    assert jnp.allclose(out_n, ref_n, atol=1e-4, rtol=1e-4), "mismatch vs reference (no mask)"

    print("KERNEL_OK")
</pallas_src>

<mosaic_0001>
module attributes {stable_mosaic.version = 11 : i64} {
  func.func @_flash_attention_kernel(%arg0: i32, %arg1: i32, %arg2: i32, %arg3: memref<1x8x128xf32, #tpu.memory_space<vmem>>, %arg4: memref<1x8x128xf32, #tpu.memory_space<vmem>>, %arg5: memref<1x8x128xf32, #tpu.memory_space<vmem>>, %arg6: memref<1x8x1xi32, #tpu.memory_space<vmem>>, %arg7: memref<1x8x128xf32, #tpu.memory_space<vmem>>, %arg8: memref<8x1xf32, #tpu.memory_space<vmem>>, %arg9: memref<8x1xf32, #tpu.memory_space<vmem>>, %arg10: memref<8x128xf32, #tpu.memory_space<vmem>>) attributes {dimension_semantics = [#tpu.dimension_semantics<parallel>, #tpu.dimension_semantics<parallel>, #tpu.dimension_semantics<arbitrary>], iteration_bounds = array<i64: 2, 1, 1>, scalar_prefetch = 0 : i64, scratch_operands = 3 : i64, tpu.core_type = #tpu.core_type<tc>, window_params = [{transform_indices = @transform_0, window_bounds = array<i64: 1, 8, 128>}, {transform_indices = @transform_1, window_bounds = array<i64: 1, 8, 128>}, {transform_indices = @transform_2, window_bounds = array<i64: 1, 8, 128>}, {transform_indices = @transform_3, window_bounds = array<i64: 1, 8, 1>}, {transform_indices = @transform_4, window_bounds = array<i64: 1, 8, 128>}]} {
    %c0_i32 = arith.constant 0 : i32
    %0 = arith.cmpi eq, %arg2, %c0_i32 : i32
    %1 = arith.extui %0 : i1 to i32
    %c0_i32_0 = arith.constant 0 : i32
    %2 = arith.cmpi ne, %1, %c0_i32_0 : i32
    scf.if %2 {
      %cst_31 = arith.constant 0xFF800000 : f32
      %48 = vector.broadcast %cst_31 : f32 to vector<8x1xf32>
      %c0_32 = arith.constant 0 : index
      %c0_33 = arith.constant 0 : index
      %49 = vector.load %arg8[%c0_32, %c0_33] : memref<8x1xf32, #tpu.memory_space<vmem>>, vector<8x1xf32>
      tpu.vector_store %arg8[%c0_32, %c0_33], %48 {strides = array<i32>} : memref<8x1xf32, #tpu.memory_space<vmem>>, vector<8x1xf32>,
      %cst_34 = arith.constant 0.000000e+00 : f32
      %50 = vector.broadcast %cst_34 : f32 to vector<8x1xf32>
      %c0_35 = arith.constant 0 : index
      %c0_36 = arith.constant 0 : index
      %51 = vector.load %arg9[%c0_35, %c0_36] : memref<8x1xf32, #tpu.memory_space<vmem>>, vector<8x1xf32>
      tpu.vector_store %arg9[%c0_35, %c0_36], %50 {strides = array<i32>} : memref<8x1xf32, #tpu.memory_space<vmem>>, vector<8x1xf32>,
      %cst_37 = arith.constant 0.000000e+00 : f32
      %52 = vector.broadcast %cst_37 : f32 to vector<8x128xf32>
      %c0_38 = arith.constant 0 : index
      %c0_39 = arith.constant 0 : index
      %53 = vector.load %arg10[%c0_38, %c0_39] : memref<8x128xf32, #tpu.memory_space<vmem>>, vector<8x128xf32>
      tpu.vector_store %arg10[%c0_38, %c0_39], %52 {strides = array<i32>} : memref<8x128xf32, #tpu.memory_space<vmem>>, vector<8x128xf32>,
    } else {
    }
    %c0 = arith.constant 0 : index
    %c0_1 = arith.constant 0 : index
    %c0_2 = arith.constant 0 : index
    %3 = vector.load %arg3[%c0, %c0_1, %c0_2] : memref<1x8x128xf32, #tpu.memory_space<vmem>>, vector<1x8x128xf32>
    %4 = vector.shape_cast %3 : vector<1x8x128xf32> to vector<8x128xf32>
    %cst = arith.constant 0.176776692 : f32
    %5 = vector.broadcast %cst : f32 to vector<8x128xf32>
    %6 = arith.mulf %4, %5 : vector<8x128xf32>
    %c0_3 = arith.constant 0 : index
    %c0_4 = arith.constant 0 : index
    %c0_5 = arith.constant 0 : index
    %7 = vector.load %arg4[%c0_3, %c0_4, %c0_5] : memref<1x8x128xf32, #tpu.memory_space<vmem>>, vector<1x8x128xf32>
    %8 = vector.shape_cast %7 : vector<1x8x128xf32> to vector<8x128xf32>
    %c0_6 = arith.constant 0 : index
    %c0_7 = arith.constant 0 : index
    %c0_8 = arith.constant 0 : index
    %9 = vector.load %arg5[%c0_6, %c0_7, %c0_8] : memref<1x8x128xf32, #tpu.memory_space<vmem>>, vector<1x8x128xf32>
    %10 = vector.shape_cast %9 : vector<1x8x128xf32> to vector<8x128xf32>
    %cst_9 = arith.constant dense<0.000000e+00> : vector<8x8xf32>
    %11 = tpu.matmul %6, %8, %cst_9 {dimension_numbers = #tpu.dot_dimension_numbers<[1], [1], [0], [0], [0, 0, 1, 0], [], []>} : vector<8x128xf32>, vector<8x128xf32>, vector<8x8xf32> -> vector<8x8xf32>
    %c8_i32 = arith.constant 8 : i32
    %12 = arith.muli %arg2, %c8_i32 : i32
    %13 = tpu.iota {dimensions = array<i32: 1>} : vector<1x8xi32>
    %14 = vector.broadcast %12 : i32 to vector<1x8xi32>
    %15 = arith.addi %14, %13 : vector<1x8xi32>
    %c0_10 = arith.constant 0 : index
    %c0_11 = arith.constant 0 : index
    %c0_12 = arith.constant 0 : index
    %16 = vector.load %arg6[%c0_10, %c0_11, %c0_12] : memref<1x8x1xi32, #tpu.memory_space<vmem>>, vector<1x8x1xi32>
    %17 = vector.shape_cast %16 : vector<1x8x1xi32> to vector<8x1xi32>
    %18 = vector.broadcast %15 : vector<1x8xi32> to vector<8x8xi32>
    %19 = vector.broadcast %17 : vector<8x1xi32> to vector<8x8xi32>
    %20 = arith.cmpi slt, %18, %19 : vector<8x8xi32>
    %cst_13 = arith.constant -1.000000e+06 : f32
    %21 = vector.broadcast %cst_13 : f32 to vector<8x8xf32>
    %22 = arith.select %20, %11, %21 : vector<8x8xi1>, vector<8x8xf32>
    %c0_14 = arith.constant 0 : index
    %c0_15 = arith.constant 0 : index
    %23 = vector.load %arg8[%c0_14, %c0_15] : memref<8x1xf32, #tpu.memory_space<vmem>>, vector<8x1xf32>
    %cst_16 = arith.constant dense<0xFF800000> : vector<8xf32>
    %24 = vector.multi_reduction <maximumf>, %22, %cst_16 [1] : vector<8x8xf32> to vector<8xf32>
    %25 = vector.shape_cast %24 : vector<8xf32> to vector<8x1xf32>
    %26 = arith.maximumf %23, %25 : vector<8x1xf32>
    %27 = arith.subf %23, %26 : vector<8x1xf32>
    %28 = math.exp %27 : vector<8x1xf32>
    %29 = vector.broadcast %26 : vector<8x1xf32> to vector<8x8xf32>
    %30 = arith.subf %22, %29 : vector<8x8xf32>
    %31 = math.exp %30 : vector<8x8xf32>
    %c0_17 = arith.constant 0 : index
    %c0_18 = arith.constant 0 : index
    %32 = vector.load %arg9[%c0_17, %c0_18] : memref<8x1xf32, #tpu.memory_space<vmem>>, vector<8x1xf32>
    %33 = arith.mulf %28, %32 : vector<8x1xf32>
    %cst_19 = arith.constant dense<0.000000e+00> : vector<8xf32>
    %34 = vector.multi_reduction <add>, %31, %cst_19 [1] : vector<8x8xf32> to vector<8xf32>
    %35 = vector.shape_cast %34 : vector<8xf32> to vector<8x1xf32>
    %36 = arith.addf %33, %35 : vector<8x1xf32>
    %c0_20 = arith.constant 0 : index
    %c0_21 = arith.constant 0 : index
    %37 = vector.load %arg9[%c0_20, %c0_21] : memref<8x1xf32, #tpu.memory_space<vmem>>, vector<8x1xf32>
    tpu.vector_store %arg9[%c0_20, %c0_21], %36 {strides = array<i32>} : memref<8x1xf32, #tpu.memory_space<vmem>>, vector<8x1xf32>,
    %c0_22 = arith.constant 0 : index
    %c0_23 = arith.constant 0 : index
    %38 = vector.load %arg10[%c0_22, %c0_23] : memref<8x128xf32, #tpu.memory_space<vmem>>, vector<8x128xf32>
    %39 = vector.broadcast %28 : vector<8x1xf32> to vector<8x128xf32>
    %40 = arith.mulf %39, %38 : vector<8x128xf32>
    %cst_24 = arith.constant dense<0.000000e+00> : vector<8x128xf32>
    %41 = tpu.matmul %31, %10, %cst_24 {dimension_numbers = #tpu.dot_dimension_numbers<[1], [0], [0], [1], [0, 0, 1, 1], [], []>} : vector<8x8xf32>, vector<8x128xf32>, vector<8x128xf32> -> vector<8x128xf32>
    %42 = arith.addf %40, %41 : vector<8x128xf32>
    %c0_25 = arith.constant 0 : index
    %c0_26 = arith.constant 0 : index
    %43 = vector.load %arg10[%c0_25, %c0_26] : memref<8x128xf32, #tpu.memory_space<vmem>>, vector<8x128xf32>
    tpu.vector_store %arg10[%c0_25, %c0_26], %42 {strides = array<i32>} : memref<8x128xf32, #tpu.memory_space<vmem>>, vector<8x128xf32>,
    %c0_27 = arith.constant 0 : index
    %c0_28 = arith.constant 0 : index
    %44 = vector.load %arg8[%c0_27, %c0_28] : memref<8x1xf32, #tpu.memory_space<vmem>>, vector<8x1xf32>
    tpu.vector_store %arg8[%c0_27, %c0_28], %26 {strides = array<i32>} : memref<8x1xf32, #tpu.memory_space<vmem>>, vector<8x1xf32>,
    %c0_i32_29 = arith.constant 0 : i32
    %45 = arith.cmpi eq, %arg2, %c0_i32_29 : i32
    %46 = arith.extui %45 : i1 to i32
    %c0_i32_30 = arith.constant 0 : i32
    %47 = arith.cmpi ne, %46, %c0_i32_30 : i32
    scf.if %47 {
      %c0_31 = arith.constant 0 : index
      %c0_32 = arith.constant 0 : index
      %48 = vector.load %arg9[%c0_31, %c0_32] : memref<8x1xf32, #tpu.memory_space<vmem>>, vector<8x1xf32>
      %49 = tpu.reciprocal %48 {approx = true} : vector<8x1xf32> -> vector<8x1xf32>
      %50 = arith.mulf %48, %49 : vector<8x1xf32>
      %cst_33 = arith.constant 2.000000e+00 : f32
      %51 = vector.broadcast %cst_33 : f32 to vector<8x1xf32>
      %52 = arith.subf %51, %50 : vector<8x1xf32>
      %53 = arith.mulf %49, %52 : vector<8x1xf32>
      %c0_34 = arith.constant 0 : index
      %c0_35 = arith.constant 0 : index
      %54 = vector.load %arg10[%c0_34, %c0_35] : memref<8x128xf32, #tpu.memory_space<vmem>>, vector<8x128xf32>
      %55 = vector.broadcast %53 : vector<8x1xf32> to vector<8x128xf32>
      %56 = arith.mulf %54, %55 : vector<8x128xf32>
      %c0_36 = arith.constant 0 : index
      %c0_37 = arith.constant 0 : index
      %c0_38 = arith.constant 0 : index
      %57 = vector.load %arg7[%c0_36, %c0_37, %c0_38] : memref<1x8x128xf32, #tpu.memory_space<vmem>>, vector<1x8x128xf32>
      %58 = vector.shape_cast %57 : vector<1x8x128xf32> to vector<8x128xf32>
      %59 = vector.shape_cast %56 : vector<8x128xf32> to vector<1x8x128xf32>
      tpu.vector_store %arg7[%c0_36, %c0_37, %c0_38], %59 {strides = array<i32>} : memref<1x8x128xf32, #tpu.memory_space<vmem>>, vector<1x8x128xf32>,
    } else {
    }
    return
  }
  func.func @transform_0(%arg0: i32, %arg1: i32, %arg2: i32) -> (i32, i32, i32) {
    %c0_i32 = arith.constant 0 : i32
    %c0_i32_0 = arith.constant 0 : i32
    return %arg0, %arg1, %c0_i32 : i32, i32, i32
  }
  func.func @transform_1(%arg0: i32, %arg1: i32, %arg2: i32) -> (i32, i32, i32) {
    %c0_i32 = arith.constant 0 : i32
    %c0_i32_0 = arith.constant 0 : i32
    return %arg0, %arg2, %c0_i32 : i32, i32, i32
  }
  func.func @transform_2(%arg0: i32, %arg1: i32, %arg2: i32) -> (i32, i32, i32) {
    %c0_i32 = arith.constant 0 : i32
    %c0_i32_0 = arith.constant 0 : i32
    return %arg0, %arg2, %c0_i32 : i32, i32, i32
  }
  func.func @transform_3(%arg0: i32, %arg1: i32, %arg2: i32) -> (i32, i32, i32) {
    %c0_i32 = arith.constant 0 : i32
    %c0_i32_0 = arith.constant 0 : i32
    return %arg0, %arg1, %c0_i32 : i32, i32, i32
  }
  func.func @transform_4(%arg0: i32, %arg1: i32, %arg2: i32) -> (i32, i32, i32) {
    %c0_i32 = arith.constant 0 : i32
    %c0_i32_0 = arith.constant 0 : i32
    return %arg0, %arg1, %c0_i32 : i32, i32, i32
  }
}

</mosaic_0001>

<llo_original>
// kernel: tpu_custom_call.1
$region0: #{tpu_custom_call.1}
  #allocation0 [shape = 'u32[]', space=smem, size = 0x4, offset = 0x4, fixed_abs, tag = 'smem constant byte address 0x4 - core index']
  #allocation1 [shape = 'u32[144,128]{1,0:T(1,128)}', space=vmem, size = 0x12000, scoped, tag = 'internal scratch']
  #allocation2 [shape = 'f32[8,1]{1,0:T(8,128)}', space=vmem, size = 0x1000, scoped, tag = 'scratch operand']
  #allocation3 [shape = 'f32[8,1]{1,0:T(8,128)}', space=vmem, size = 0x1000, scoped, tag = 'scratch operand']
  #allocation4 [shape = 'f32[8,128]{1,0:T(8,128)}', space=vmem, size = 0x1000, scoped, tag = 'scratch operand']
  %s0 = inlined_call_operand.vmem [shape: f32[2,8,128], index: 0, kind: input, shape index: {}]
  %s1 = inlined_call_operand.hbm [shape: f32[2,8,128], index: 1, kind: input, shape index: {}]
  %s2 = inlined_call_operand.hbm [shape: f32[2,8,128], index: 2, kind: input, shape index: {}]
  %s3 = inlined_call_operand.vmem [shape: s32[2,8,1], index: 3, kind: input, shape index: {}]
  %s4 = inlined_call_operand.hbm [shape: f32[2,8,128], index: 4, kind: output, shape index: {}]
  %s5 = sld [smem:[#allocation0]]
  $region65: #{tpu_custom_call.1} parent=0
    _
  %s7 = ssub.s32 1, %s5
  %s8 = scalar_select 0, %s7, %s5
  $region1: #{tpu_custom_call.1} parent=0
    #allocation5 [shape = 'u8[8192]{0}', space=vmem, size = 0x2000, scoped, tag = 'input window, operand 1']
    #allocation6 [shape = 's32[2]{0}', space=sflag, size = 0x8, scoped, tag = 'scoped memory for tpu_custom_call.1']
    #allocation7 [shape = 's32[2]{0}', space=sflag, size = 0x8, scoped, tag = 'scoped memory for tpu_custom_call.1']
    #allocation8 [shape = 'u8[8192]{0}', space=vmem, size = 0x2000, scoped, tag = 'input window, operand 2']
    #allocation9 [shape = 's32[2]{0}', space=sflag, size = 0x8, scoped, tag = 'scoped memory for tpu_custom_call.1']
    #allocation10 [shape = 'u8[8192]{0}', space=vmem, size = 0x2000, scoped, tag = 'output window, operand 0']
    %9 = vsyncpa [#allocation6], 0
    %s10 = scalar_lea.sflag [#allocation6], 1
    %11 = vsyncpa %s10, 0
    %12 = vsyncpa [#allocation9], 0
    %s13 = scalar_lea.sflag [#allocation9], 1
    %14 = vsyncpa %s13, 0
    %15 = vsyncpa [#allocation7], 0
    %s16 = scalar_lea.sflag [#allocation7], 1
    %17 = vsyncpa %s16, 0
    loop: start=0, step=1, limit=4
    $region2: #{tpu_custom_call.1} parent=1 // loop_pre_header
      _
    $region3: #{tpu_custom_call.1} parent=1 // loop_header
      %s19 = sphi 0, %s23
      %p20 = scmp.ge.s32.totalorder %s19, 4
      %s26 = sphi 0, %s45
      %s27 = sphi 0, %s41
      %s28 = sphi 0, %s37
      %s29 = sphi 0, %s26
      %s30 = sphi 0, %s27
      %s31 = sphi 0, %s28
      %s32 = sphi 0, %s29
      %s33 = sphi 0, %s30
      %s34 = sphi 0, %s31
      %s50 = sphi 0, %s52
      %s53 = sphi 0, %s50
      %s54 = sphi 0, %s53
      %s70 = sphi 0, %s54
      %s78 = sphi 0, %s80
      %s81 = sphi 0, %s78
      %s82 = sphi 0, %s81
      %s98 = sphi 0, %s82
      %s106 = sphi 0, %s108
      %s109 = sphi 0, %s106
      %s110 = sphi 0, %s109
      %s126 = sphi 0, %s110
      %s134 = sphi 0, %s136
      %s137 = sphi 0, %s134
      %s138 = sphi 0, %s137
      %s154 = sphi 0, %s138
      %s162 = sphi 0, %s164
      %s165 = sphi 0, %s162
      %s166 = sphi 0, %s165
      %s182 = sphi 0, %s166
    $region4: #{tpu_custom_call.1} parent=1 // loop_header_branch
      %22 = sbr.rel (%p20) target = $region8
    $region5: #{tpu_custom_call.1} parent=1 // loop_body
      %s24 = ssub.s32 %s19, 1
      %s25 = ssub.s32 %s19, 2
      %s35 = sadd.s32 1, %s28
      %p36 = scmp.ge.s32.totalorder %s35, 1
      %s37 = scalar_select %p36, 0, %s35
      %s38 = sadd.s32 1, %s27
      %s39 = scalar_select %p36, %s38, %s27
      %p40 = scmp.ge.s32.totalorder %s39, 1
      %s41 = scalar_select %p40, 0, %s39
      %s42 = sadd.s32 1, %s26
      %s43 = scalar_select %p40, %s42, %s26
      %p44 = scmp.ge.s32.totalorder %s43, 2
      %s45 = scalar_select %p44, 0, %s43
      %s46 = ssub.s32 %s26, %s45
      %s47 = ssub.s32 %s27, %s41
      %s48 = sor.u32 %s46, %s47
      %p49 = scmp.eq.s32.totalorder %s48, 0
      %s51 = sadd.s32 %s50, 1
      %s52 = scalar_select %p49, %s50, %s51
      %p55 = pneg %p49
      %p56 = scmp.eq.s32.totalorder %s19, 1
      %p57 = por %p55, %p56
      %p58 = scmp.ne.s32.totalorder %s50, %s53
      %p59 = scmp.eq.s32.totalorder %s19, 0
      %p60 = por %p58, %p59
      %p61 = scmp.ne.s32.totalorder %s50, %s53
      %p62 = scmp.eq.s32.totalorder %s24, 1
      %p63 = por %p61, %p62
      %p64 = scmp.ne.s32.totalorder %s53, %s54
      %p65 = scmp.eq.s32.totalorder %s24, 0
      %p66 = por %p64, %p65
      %p67 = scmp.ne.s32.totalorder %s53, %s54
      %p68 = scmp.eq.s32.totalorder %s25, 1
      %p69 = por %p67, %p68
      %p71 = scmp.ne.s32.totalorder %s54, %s70
      %p72 = scmp.eq.s32.totalorder %s25, 0
      %p73 = por %p71, %p72
      %s74 = ssub.s32 %s26, %s45
      %s75 = ssub.s32 %s28, %s37
      %s76 = sor.u32 %s74, %s75
      %p77 = scmp.eq.s32.totalorder %s76, 0
      %s79 = sadd.s32 %s78, 1
      %s80 = scalar_select %p77, %s78, %s79
      %p83 = pneg %p77
      %p84 = scmp.eq.s32.totalorder %s19, 1
      %p85 = por %p83, %p84
      %p86 = scmp.ne.s32.totalorder %s78, %s81
      %p87 = scmp.eq.s32.totalorder %s19, 0
      %p88 = por %p86, %p87
      %p89 = scmp.ne.s32.totalorder %s78, %s81
      %p90 = scmp.eq.s32.totalorder %s24, 1
      %p91 = por %p89, %p90
      %p92 = scmp.ne.s32.totalorder %s81, %s82
      %p93 = scmp.eq.s32.totalorder %s24, 0
      %p94 = por %p92, %p93
      %p95 = scmp.ne.s32.totalorder %s81, %s82
      %p96 = scmp.eq.s32.totalorder %s25, 1
      %p97 = por %p95, %p96
      %p99 = scmp.ne.s32.totalorder %s82, %s98
      %p100 = scmp.eq.s32.totalorder %s25, 0
      %p101 = por %p99, %p100
      %s102 = ssub.s32 %s26, %s45
      %s103 = ssub.s32 %s28, %s37
      %s104 = sor.u32 %s102, %s103
      %p105 = scmp.eq.s32.totalorder %s104, 0
      %s107 = sadd.s32 %s106, 1
      %s108 = scalar_select %p105, %s106, %s107
      %p111 = pneg %p105
      %p112 = scmp.eq.s32.totalorder %s19, 1
      %p113 = por %p111, %p112
      %p114 = scmp.ne.s32.totalorder %s106, %s109
      %p115 = scmp.eq.s32.totalorder %s19, 0
      %p116 = por %p114, %p115
      %p117 = scmp.ne.s32.totalorder %s106, %s109
      %p118 = scmp.eq.s32.totalorder %s24, 1
      %p119 = por %p117, %p118
      %p120 = scmp.ne.s32.totalorder %s109, %s110
      %p121 = scmp.eq.s32.totalorder %s24, 0
      %p122 = por %p120, %p121
      %p123 = scmp.ne.s32.totalorder %s109, %s110
      %p124 = scmp.eq.s32.totalorder %s25, 1
      %p125 = por %p123, %p124
      %p127 = scmp.ne.s32.totalorder %s110, %s126
      %p128 = scmp.eq.s32.totalorder %s25, 0
      %p129 = por %p127, %p128
      %s130 = ssub.s32 %s26, %s45
      %s131 = ssub.s32 %s27, %s41
      %s132 = sor.u32 %s130, %s131
      %p133 = scmp.eq.s32.totalorder %s132, 0
      %s135 = sadd.s32 %s134, 1
      %s136 = scalar_select %p133, %s134, %s135
      %p139 = pneg %p133
      %p140 = scmp.eq.s32.totalorder %s19, 1
      %p141 = por %p139, %p140
      %p142 = scmp.ne.s32.totalorder %s134, %s137
      %p143 = scmp.eq.s32.totalorder %s19, 0
      %p144 = por %p142, %p143
      %p145 = scmp.ne.s32.totalorder %s134, %s137
      %p146 = scmp.eq.s32.totalorder %s24, 1
      %p147 = por %p145, %p146
      %p148 = scmp.ne.s32.totalorder %s137, %s138
      %p149 = scmp.eq.s32.totalorder %s24, 0
      %p150 = por %p148, %p149
      %p151 = scmp.ne.s32.totalorder %s137, %s138
      %p152 = scmp.eq.s32.totalorder %s25, 1
      %p153 = por %p151, %p152
      %p155 = scmp.ne.s32.totalorder %s138, %s154
      %p156 = scmp.eq.s32.totalorder %s25, 0
      %p157 = por %p155, %p156
      %s158 = ssub.s32 %s26, %s45
      %s159 = ssub.s32 %s27, %s41
      %s160 = sor.u32 %s158, %s159
      %p161 = scmp.eq.s32.totalorder %s160, 0
      %s163 = sadd.s32 %s162, 1
      %s164 = scalar_select %p161, %s162, %s163
      %p167 = pneg %p161
      %p168 = scmp.eq.s32.totalorder %s19, 1
      %p169 = por %p167, %p168
      %p170 = scmp.ne.s32.totalorder %s162, %s165
      %p171 = scmp.eq.s32.totalorder %s19, 0
      %p172 = por %p170, %p171
      %p173 = scmp.ne.s32.totalorder %s162, %s165
      %p174 = scmp.eq.s32.totalorder %s24, 1
      %p175 = por %p173, %p174
      %p176 = scmp.ne.s32.totalorder %s165, %s166
      %p177 = scmp.eq.s32.totalorder %s24, 0
      %p178 = por %p176, %p177
      %p179 = scmp.ne.s32.totalorder %s165, %s166
      %p180 = scmp.eq.s32.totalorder %s25, 1
      %p181 = por %p179, %p180
      %p183 = scmp.ne.s32.totalorder %s166, %s182
      %p184 = scmp.eq.s32.totalorder %s25, 0
      %p185 = por %p183, %p184
      %p186 = scmp.le.s32.totalorder 1, %s19
      %p187 = scmp.lt.s32.totalorder %s19, 3
      %p188 = pnand %p186, %p187
      %p189 = pneg %p188
      // Predicated region
      $region9: #{tpu_custom_call.1} parent=5 // pred_check
        _
      $region10: #{tpu_custom_call.1} parent=5 // pred_check_branch
        %191 = sbr.rel (%p188) target = $region12
      $region11: #{tpu_custom_call.1} parent=5 // pred_region
        %s192 = ssub.s32 %s19, 1
      $region12: #{tpu_custom_call.1} parent=5 // pred_fallthru
        _
      %p193 = scmp.lt.s32.totalorder %s19, 2
      // Predicated region
      $region13: #{tpu_custom_call.1} parent=5 // pred_check
        %p194 = pneg %p193
      $region14: #{tpu_custom_call.1} parent=5 // pred_check_branch
        %196 = sbr.rel (%p194) target = $region16
      $region15: #{tpu_custom_call.1} parent=5 // pred_region
        // Predicated region
        $region17: #{tpu_custom_call.1} parent=15 // pred_check
          %p197 = pneg %p60
        $region18: #{tpu_custom_call.1} parent=15 // pred_check_branch
          %199 = sbr.rel (%p197) target = $region20
        $region19: #{tpu_custom_call.1} parent=15 // pred_region
          %p200 = scmp.lt.s32.totalorder %s26, 1
          %s201 = scalar_select %p200, %s26, 1
          %p202 = scmp.lt.s32.totalorder %s27, 0
          %s203 = scalar_select %p202, %s27, 0
          %s204 = sadd.s32 %s203, %s201
          %s205 = smul.addr %s204, 8
          %s206 = scalar_lea.vmem %s0, %s205
        $region20: #{tpu_custom_call.1} parent=15 // pred_fallthru
          _
        // Predicated region
        $region21: #{tpu_custom_call.1} parent=15 // pred_check
          %p207 = pneg %p88
        $region22: #{tpu_custom_call.1} parent=15 // pred_check_branch
          %209 = sbr.rel (%p207) target = $region24
        $region23: #{tpu_custom_call.1} parent=15 // pred_region
          %s210 = sand.u32 %s78, 1
          %s211 = scalar_lea.sflag [#allocation6], %s210
          %s212 = sand.u32 %s78, 1
          %s213 = smul.addr %s212, 8
          %s214 = scalar_lea.vmem [#allocation5], %s213
          %s216 = ssub.s32 128, 128
          %217 = vsyncadd %s211, %s216
          %s218 = sadd.s32 %s28, %s26
          %s219 = smul.addr %s218, 128
          %s220 = scalar_lea.hbm %s1, %s219
          %s222 = sshll.u32 %s214, 4
          %s223 = int_to_ptr.vmem [resolvable:$true] %s222
          %225 = dma.hbm_to_vmem [thread:$0]  %s220, 128, %s223, %s211
        $region24: #{tpu_custom_call.1} parent=15 // pred_fallthru
          _
        // Predicated region
        $region25: #{tpu_custom_call.1} parent=15 // pred_check
          %p226 = pneg %p116
        $region26: #{tpu_custom_call.1} parent=15 // pred_check_branch
          %228 = sbr.rel (%p226) target = $region28
        $region27: #{tpu_custom_call.1} parent=15 // pred_region
          %s229 = sand.u32 %s106, 1
          %s230 = scalar_lea.sflag [#allocation9], %s229
          %s231 = sand.u32 %s106, 1
          %s232 = smul.addr %s231, 8
          %s233 = scalar_lea.vmem [#allocation8], %s232
          %s235 = ssub.s32 128, 128
          %236 = vsyncadd %s230, %s235
          %s237 = sadd.s32 %s28, %s26
          %s238 = smul.addr %s237, 128
          %s239 = scalar_lea.hbm %s2, %s238
          %s241 = sshll.u32 %s233, 4
          %s242 = int_to_ptr.vmem [resolvable:$true] %s241
          %244 = dma.hbm_to_vmem [thread:$0]  %s239, 128, %s242, %s230
        $region28: #{tpu_custom_call.1} parent=15 // pred_fallthru
          _
        // Predicated region
        $region29: #{tpu_custom_call.1} parent=15 // pred_check
          %p245 = pneg %p144
        $region30: #{tpu_custom_call.1} parent=15 // pred_check_branch
          %247 = sbr.rel (%p245) target = $region32
        $region31: #{tpu_custom_call.1} parent=15 // pred_region
          %p248 = scmp.lt.s32.totalorder %s26, 1
          %s249 = scalar_select %p248, %s26, 1
          %p250 = scmp.lt.s32.totalorder %s27, 0
          %s251 = scalar_select %p250, %s27, 0
          %s252 = sadd.s32 %s251, %s249
          %s253 = smul.addr %s252, 8
          %s254 = scalar_lea.vmem %s3, %s253
        $region32: #{tpu_custom_call.1} parent=15 // pred_fallthru
          _
      $region16: #{tpu_custom_call.1} parent=5 // pred_fallthru
        _
      %p255 = scmp.le.s32.totalorder 1, %s19
      %p256 = scmp.lt.s32.totalorder %s19, 3
      %p257 = pnand %p255, %p256
      %p258 = pneg %p257
      // Predicated region
      $region33: #{tpu_custom_call.1} parent=5 // pred_check
        _
      $region34: #{tpu_custom_call.1} parent=5 // pred_check_branch
        %260 = sbr.rel (%p257) target = $region36
      $region35: #{tpu_custom_call.1} parent=5 // pred_region
        %s261 = ssub.s32 %s19, 1
        %s262 = sand.u32 %s81, 1
        %s263 = scalar_lea.sflag [#allocation6], %s262
        %s264 = sand.u32 %s81, 1
        %s265 = smul.addr %s264, 8
        %s266 = scalar_lea.vmem [#allocation5], %s265
        // Predicated region
        $region37: #{tpu_custom_call.1} parent=35 // pred_check
          %p267 = pneg %p94
        $region38: #{tpu_custom_call.1} parent=35 // pred_check_branch
          %269 = sbr.rel (%p267) target = $region40
        $region39: #{tpu_custom_call.1} parent=35 // pred_region
          %270 = dma.done %s263, 128
        $region40: #{tpu_custom_call.1} parent=35 // pred_fallthru
          _
        %s271 = sand.u32 %s109, 1
        %s272 = scalar_lea.sflag [#allocation9], %s271
        %s273 = sand.u32 %s109, 1
        %s274 = smul.addr %s273, 8
        %s275 = scalar_lea.vmem [#allocation8], %s274
        // Predicated region
        $region41: #{tpu_custom_call.1} parent=35 // pred_check
          %p276 = pneg %p122
        $region42: #{tpu_custom_call.1} parent=35 // pred_check_branch
          %278 = sbr.rel (%p276) target = $region44
        $region43: #{tpu_custom_call.1} parent=35 // pred_region
          %279 = dma.done %s272, 128
        $region44: #{tpu_custom_call.1} parent=35 // pred_fallthru
          _
        %p280 = scmp.lt.s32.totalorder %s29, 1
        %s281 = scalar_select %p280, %s29, 1
        %p282 = scmp.lt.s32.totalorder %s30, 0
        %s283 = scalar_select %p282, %s30, 0
        %s284 = sadd.s32 %s283, %s281
        %s285 = smul.addr %s284, 8
        %s286 = scalar_lea.vmem %s0, %s285
        %p287 = pneg %p66
        %p288 = pneg %p63
        %s289 = sand.u32 %s81, 1
        %s290 = scalar_lea.sflag [#allocation6], %s289
        %s291 = sand.u32 %s81, 1
        %s292 = smul.addr %s291, 8
        %s293 = scalar_lea.vmem [#allocation5], %s292
        %p294 = pneg %p94
        %p295 = pneg %p91
        %s296 = sand.u32 %s109, 1
        %s297 = scalar_lea.sflag [#allocation9], %s296
        %s298 = sand.u32 %s109, 1
        %s299 = smul.addr %s298, 8
        %s300 = scalar_lea.vmem [#allocation8], %s299
        %p301 = pneg %p122
        %p302 = pneg %p119
        %p303 = scmp.lt.s32.totalorder %s29, 1
        %s304 = scalar_select %p303, %s29, 1
        %p305 = scmp.lt.s32.totalorder %s30, 0
        %s306 = scalar_select %p305, %s30, 0
        %s307 = sadd.s32 %s306, %s304
        %s308 = smul.addr %s307, 8
        %s309 = scalar_lea.vmem %s3, %s308
        %p310 = pneg %p150
        %p311 = pneg %p147
        %p312 = pneg %p178
        %p313 = pneg %p175
        %s314 = sand.u32 %s165, 1
        %s315 = scalar_lea.sflag [#allocation7], %s314
        %s316 = sand.u32 %s165, 1
        %s317 = smul.addr %s316, 8
        %s318 = scalar_lea.vmem [#allocation10], %s317
        %p319 = scmp.lt.s32.totalorder %s29, 1
        %s320 = scalar_select %p319, %s29, 1
        %p321 = scmp.lt.s32.totalorder %s30, 0
        %s322 = scalar_select %p321, %s30, 0
        %s323 = sadd.s32 %s322, %s320
        %s324 = smul.addr %s323, 8
        %s325 = scalar_lea.vmem %s0, %s324
        %p326 = scmp.lt.s32.totalorder %s29, 1
        %s327 = scalar_select %p326, %s29, 1
        %p328 = scmp.lt.s32.totalorder %s30, 0
        %s329 = scalar_select %p328, %s30, 0
        %s330 = sadd.s32 %s329, %s327
        %s331 = smul.addr %s330, 8
        %s332 = scalar_lea.vmem %s3, %s331
        %p333 = scmp.eq.s32.totalorder %s31, 0
        // Predicated region
        $region45: #{tpu_custom_call.1} parent=35 // pred_check
          %p334 = pneg %p333
        $region46: #{tpu_custom_call.1} parent=35 // pred_check_branch
          %336 = sbr.rel (%p334) target = $region48
        $region47: #{tpu_custom_call.1} parent=35 // pred_region
          %vm337 = vcmask 7168
          %338 = vst.msk [vmem:[#allocation2] sm:$0xff] %vm337, -inf
          %339 = vst.msk [vmem:[#allocation3] sm:$0xff] %vm337, 0.0
          %340 = vst [vmem:[#allocation4] sm:$0xff] 0.0
        $region48: #{tpu_custom_call.1} parent=35 // pred_fallthru
          _
        %v341 = vld [vmem:[%s325] sm:$0xff]
        %v342 = vmul.f32 %v341, 0.17677669
        %v343 = vld [vmem:[%s266] sm:$0xff]
        %v344 = vld [vmem:[%s275] sm:$0xff]
        %345 = vmatprep.subr.mxu0 0.0
        %346 = vmatpush1.xpose.msra.mxu0 %v343
        %347 = vmatprep.subr.mxu0 0.0
        %348 = vmatpush1.xpose.msra.mxu0 0.0
        %349 = vmatprep.subr.mxu0 0.0
        %350 = vmatpush1.xpose.msra.mxu0 0.0
        %351 = vmatprep.subr.mxu0 0.0
        %352 = vmatpush1.xpose.msra.mxu0 0.0
        %353 = vmatprep.subr.mxu0 0.0
        %354 = vmatpush1.xpose.msra.mxu0 0.0
        %355 = vmatprep.subr.mxu0 0.0
        %356 = vmatpush1.xpose.msra.mxu0 0.0
        %357 = vmatprep.subr.mxu0 0.0
        %358 = vmatpush1.xpose.msra.mxu0 0.0
        %359 = vmatprep.subr.mxu0 0.0
        %360 = vmatpush1.xpose.msra.mxu0 0.0
        %361 = vmatprep.subr.mxu0 0.0
        %362 = vmatpush1.xpose.msra.mxu0 0.0
        %363 = vmatprep.subr.mxu0 0.0
        %364 = vmatpush1.xpose.msra.mxu0 0.0
        %365 = vmatprep.subr.mxu0 0.0
        %366 = vmatpush1.xpose.msra.mxu0 0.0
        %367 = vmatprep.subr.mxu0 0.0
        %368 = vmatpush1.xpose.msra.mxu0 0.0
        %369 = vmatprep.subr.mxu0 0.0
        %370 = vmatpush1.xpose.msra.mxu0 0.0
        %371 = vmatprep.subr.mxu0 0.0
        %372 = vmatpush1.xpose.msra.mxu0 0.0
        %373 = vmatprep.subr.mxu0 0.0
        %374 = vmatpush1.xpose.msra.mxu0 0.0
        %375 = vmatprep.subr.mxu0 0.0
        %376 = vmatpush1.xpose.msra.mxu0 0.0
        %377 = vmatprep.subr.mxu0 0.0
        %378 = vmatpush1.xpose.msra.mxu0 0.0
        %379 = vmatprep.subr.mxu0 0.0
        %380 = vmatpush1.xpose.msra.mxu0 0.0
        %381 = vmatprep.subr.mxu0 0.0
        %382 = vmatpush1.xpose.msra.mxu0 0.0
        %383 = vmatprep.subr.mxu0 0.0
        %384 = vmatpush1.xpose.msra.mxu0 0.0
        %385 = vmatprep.subr.mxu0 0.0
        %386 = vmatpush1.xpose.msra.mxu0 0.0
        %387 = vmatprep.subr.mxu0 0.0
        %388 = vmatpush1.xpose.msra.mxu0 0.0
        %389 = vmatprep.subr.mxu0 0.0
        %390 = vmatpush1.xpose.msra.mxu0 0.0
        %391 = vmatprep.subr.mxu0 0.0
        %392 = vmatpush1.xpose.msra.mxu0 0.0
        %393 = vmatprep.subr.mxu0 0.0
        %394 = vmatpush1.xpose.msra.mxu0 0.0
        %395 = vmatprep.subr.mxu0 0.0
        %396 = vmatpush1.xpose.msra.mxu0 0.0
        %397 = vmatprep.subr.mxu0 0.0
        %398 = vmatpush1.xpose.msra.mxu0 0.0
        %399 = vmatprep.subr.mxu0 0.0
        %400 = vmatpush1.xpose.msra.mxu0 0.0
        %401 = vmatprep.subr.mxu0 0.0
        %402 = vmatpush1.xpose.msra.mxu0 0.0
        %403 = vmatprep.subr.mxu0 0.0
        %404 = vmatpush1.xpose.msra.mxu0 0.0
        %405 = vmatprep.subr.mxu0 0.0
        %406 = vmatpush1.xpose.msra.mxu0 0.0
        %407 = vmatprep.subr.mxu0 0.0
        %408 = vmatpush1.xpose.msra.mxu0 0.0
        %409 = vmatprep.mubr.f32.mxu0 0.0
        %410 = vmatmul.mubr.f32.gmra.mrb[0].mxu0 %v342
        %v411 = vpop.f32.mrb[0].mxu0
        %v412 = vadd.f32 0.0, %v411
        %v413 = vpop.f32.mrb[0].mxu0
        %414 = vdwg.mxu0
        %s415 = smul.u32 %s31, 8
        %v416 = vlaneseq
        %v417 = vand.u32 %v416, 127
        %v418 = vstv %s415
        %v419 = vadd.s32 %v418, %v417
        %v420 = vld [vmem:[%s332] sm:$0xff]
        %421 = vset.pattern.permute.xlu0 0
        %422 = vperm.xlu0 %421, %v420
        %v423 = vpop.permute.xlu0 %422
        %vm424 = vcmp.lt.s32.totalorder %v419, %v423
        %v425 = vsel %vm424, %v412, -1000000.0
        %v426 = vld [vmem:[#allocation2] sm:$0xff]
        %vm427 = vcmask 64512
        %v428 = vsel %vm427, %v425, -inf
        %429 = vmax.xlane.f32.xlu0 %v428
        %v430 = vpop.xlane.xlu0 %429
        %v431 = vmax.f32 %v426, %v430
        %v432 = vsub.f32 %v426, %v431
        %v433 = vmul.f32 %v432, 1.442695
        %v434 = vpow.pop %v433
        %436 = vset.pattern.permute.xlu0 0
        %437 = vperm.xlu0 %436, %v431
        %v438 = vpop.permute.xlu0 %437
        %v440 = vsub.f32 %v425, %v438
        %v441 = vmul.f32 %v440, 1.442695
        %v442 = vpow.pop %v441
        %v443 = vld [vmem:[#allocation3] sm:$0xff]
        %v444 = vmul.f32 %v434, %v443
        %v445 = vsel %vm427, %v442, 0.0
        %446 = vadd.xlane.f32.xlu0 %v445
        %v447 = vpop.xlane.xlu0 %446
        %v448 = vadd.f32 %v444, %v447
        %vm449 = vcmask 7168
        %450 = vst.msk [vmem:[#allocation3] sm:$0xff] %vm449, %v448
        %v451 = vld [vmem:[#allocation4] sm:$0xff]
        %453 = vset.pattern.permute.xlu0 0
        %454 = vperm.xlu0 %453, %v434
        %v455 = vpop.permute.xlu0 %454
        %v457 = vmul.f32 %v455, %v451
        %v459 = vsel %vm427, %v442, 0
        %461 = vmatprep.subr.mxu0 0.0
        %462 = vmatpush1.msra.mxu0 %v344
        %463 = vmatprep.subr.mxu0 0.0
        %464 = vmatpush1.msra.mxu0 0.0
        %465 = vmatprep.subr.mxu0 0.0
        %466 = vmatpush1.msra.mxu0 0.0
        %467 = vmatprep.subr.mxu0 0.0
        %468 = vmatpush1.msra.mxu0 0.0
        %469 = vmatprep.subr.mxu0 0.0
        %470 = vmatpush1.msra.mxu0 0.0
        %471 = vmatprep.subr.mxu0 0.0
        %472 = vmatpush1.msra.mxu0 0.0
        %473 = vmatprep.subr.mxu0 0.0
        %474 = vmatpush1.msra.mxu0 0.0
        %475 = vmatprep.subr.mxu0 0.0
        %476 = vmatpush1.msra.mxu0 0.0
        %477 = vmatprep.subr.mxu0 0.0
        %478 = vmatpush1.msra.mxu0 0.0
        %479 = vmatprep.subr.mxu0 0.0
        %480 = vmatpush1.msra.mxu0 0.0
        %481 = vmatprep.subr.mxu0 0.0
        %482 = vmatpush1.msra.mxu0 0.0
        %483 = vmatprep.subr.mxu0 0.0
        %484 = vmatpush1.msra.mxu0 0.0
        %485 = vmatprep.subr.mxu0 0.0
        %486 = vmatpush1.msra.mxu0 0.0
        %487 = vmatprep.subr.mxu0 0.0
        %488 = vmatpush1.msra.mxu0 0.0
        %489 = vmatprep.subr.mxu0 0.0
        %490 = vmatpush1.msra.mxu0 0.0
        %491 = vmatprep.subr.mxu0 0.0
        %492 = vmatpush1.msra.mxu0 0.0
        %493 = vmatprep.subr.mxu0 0.0
        %494 = vmatpush1.msra.mxu0 0.0
        %495 = vmatprep.subr.mxu0 0.0
        %496 = vmatpush1.msra.mxu0 0.0
        %497 = vmatprep.subr.mxu0 0.0
        %498 = vmatpush1.msra.mxu0 0.0
        %499 = vmatprep.subr.mxu0 0.0
        %500 = vmatpush1.msra.mxu0 0.0
        %501 = vmatprep.subr.mxu0 0.0
        %502 = vmatpush1.msra.mxu0 0.0
        %503 = vmatprep.subr.mxu0 0.0
        %504 = vmatpush1.msra.mxu0 0.0
        %505 = vmatprep.subr.mxu0 0.0
        %506 = vmatpush1.msra.mxu0 0.0
        %507 = vmatprep.subr.mxu0 0.0
        %508 = vmatpush1.msra.mxu0 0.0
        %509 = vmatprep.subr.mxu0 0.0
        %510 = vmatpush1.msra.mxu0 0.0
        %511 = vmatprep.subr.mxu0 0.0
        %512 = vmatpush1.msra.mxu0 0.0
        %513 = vmatprep.subr.mxu0 0.0
        %514 = vmatpush1.msra.mxu0 0.0
        %515 = vmatprep.subr.mxu0 0.0
        %516 = vmatpush1.msra.mxu0 0.0
        %517 = vmatprep.subr.mxu0 0.0
        %518 = vmatpush1.msra.mxu0 0.0
        %519 = vmatprep.subr.mxu0 0.0
        %520 = vmatpush1.msra.mxu0 0.0
        %521 = vmatprep.subr.mxu0 0.0
        %522 = vmatpush1.msra.mxu0 0.0
        %523 = vmatprep.subr.mxu0 0.0
        %524 = vmatpush1.msra.mxu0 0.0
        %525 = vmatprep.mubr.f32.mxu0 0.0
        %526 = vmatmul.mubr.f32.gmra.mrb[0].mxu0 %v459
        %v527 = vpop.f32.mrb[0].mxu0
        %v528 = vadd.f32 0.0, %v527
        %v529 = vpop.f32.mrb[0].mxu0
        %530 = vdwg.mxu0
        %v531 = vadd.f32 %v457, %v528
        %532 = vst [vmem:[#allocation4] sm:$0xff] %v531
        %533 = vst.msk [vmem:[#allocation2] sm:$0xff] %vm449, %v431
        // Predicated region
        $region49: #{tpu_custom_call.1} parent=35 // pred_check
          %p534 = pneg %p333
        $region50: #{tpu_custom_call.1} parent=35 // pred_check_branch
          %536 = sbr.rel (%p534) target = $region52
        $region51: #{tpu_custom_call.1} parent=35 // pred_region
          %v537 = vld [vmem:[#allocation3] sm:$0xff]
          %v538 = vrcp.pop %v537
          %v539 = vmul.f32 %v537, %v538
          %v540 = vsub.f32 2.0, %v539
          %v541 = vmul.f32 %v538, %v540
          %v542 = vld [vmem:[#allocation4] sm:$0xff]
          %544 = vset.pattern.permute.xlu0 0
          %545 = vperm.xlu0 %544, %v541
          %v546 = vpop.permute.xlu0 %545
          %v548 = vmul.f32 %v542, %v546
          %549 = vst [vmem:[%s318] sm:$0xff] %v548
        $region52: #{tpu_custom_call.1} parent=35 // pred_fallthru
          _
        %s550 = sand.u32 %s165, 1
        %s551 = scalar_lea.sflag [#allocation7], %s550
        %s552 = sand.u32 %s165, 1
        %s553 = smul.addr %s552, 8
        %s554 = scalar_lea.vmem [#allocation10], %s553
        // Predicated region
        $region53: #{tpu_custom_call.1} parent=35 // pred_check
          %p555 = pneg %p175
        $region54: #{tpu_custom_call.1} parent=35 // pred_check_branch
          %557 = sbr.rel (%p555) target = $region56
        $region55: #{tpu_custom_call.1} parent=35 // pred_region
          %s559 = ssub.s32 128, 128
          %560 = vsyncadd %s551, %s559
          %s561 = sadd.s32 %s30, %s29
          %s562 = smul.addr %s561, 128
          %s563 = scalar_lea.hbm %s4, %s562
          %s565 = sshll.u32 %s554, 4
          %s566 = int_to_ptr.vmem [resolvable:$true] %s565
          %568 = dma.vmem_to_hbm [thread:$0]  %s566, 128, %s563, %s551
        $region56: #{tpu_custom_call.1} parent=35 // pred_fallthru
          _
      $region36: #{tpu_custom_call.1} parent=5 // pred_fallthru
        _
      %p569 = scmp.le.s32.totalorder 2, %s19
      // Predicated region
      $region57: #{tpu_custom_call.1} parent=5 // pred_check
        %p570 = pneg %p569
      $region58: #{tpu_custom_call.1} parent=5 // pred_check_branch
        %572 = sbr.rel (%p570) target = $region60
      $region59: #{tpu_custom_call.1} parent=5 // pred_region
        %s573 = ssub.s32 %s19, 2
        // Predicated region
        $region61: #{tpu_custom_call.1} parent=59 // pred_check
          %p574 = pneg %p181
        $region62: #{tpu_custom_call.1} parent=59 // pred_check_branch
          %576 = sbr.rel (%p574) target = $region64
        $region63: #{tpu_custom_call.1} parent=59 // pred_region
          %s577 = sand.u32 %s166, 1
          %s578 = scalar_lea.sflag [#allocation7], %s577
          %s579 = sand.u32 %s166, 1
          %s580 = smul.addr %s579, 8
          %s581 = scalar_lea.vmem [#allocation10], %s580
          %582 = dma.done %s578, 128
        $region64: #{tpu_custom_call.1} parent=59 // pred_fallthru
          _
      $region60: #{tpu_custom_call.1} parent=5 // pred_fallthru
        _
    $region6: #{tpu_custom_call.1} parent=1 // loop_footer
      %s23 = sadd.s32 1, %s19
    $region7: #{tpu_custom_call.1} parent=1 // loop_footer_branch
      %18 = sbr.rel target = $region3
    $region8: #{tpu_custom_call.1} parent=1 // loop_exit
      _
    %583 = vsyncpa [#allocation6], 1
    %s584 = scalar_lea.sflag [#allocation6], 1
    %585 = vsyncpa %s584, 1
    %586 = vsyncpa [#allocation9], 1
    %s587 = scalar_lea.sflag [#allocation9], 1
    %588 = vsyncpa %s587, 1
    %589 = vsyncpa [#allocation7], 1
    %s590 = scalar_lea.sflag [#allocation7], 1
    %591 = vsyncpa %s590, 1

</llo_original>
